<compile_context>
chip_gen: v7x
topology: tpu7x:2x2x1
jax: 0.10.0
libtpu: 0.0.40
codegen_flags: <defaults>
</compile_context>

<pallas_src>
import functools

import jax
import jax.numpy as jnp
import numpy as np
from jax.experimental import pallas as pl
from jax.experimental.pallas import tpu as pltpu


EXPANSION = 4

# Tiles are chosen so the double-buffered working set stays well under the
# smallest scoped default (v7x: 32 MiB of 64 MiB physical).  The explicit
# limit is still < v7x physical and comfortably above v5e's 16 MiB default.
_VMEM_LIMIT_BYTES = 48 * 1024 * 1024
_TILE_VMEM_BUDGET = 20 * 1024 * 1024


def _round_up(v, m):
    return ((v + m - 1) // m) * m


# ----------------------------------------------------------------------------
# Generic fused 1x1-conv kernel:  out = [relu]( X @ W + shift [+ residual] )
# X, W, residual are bf16 (BN scale pre-folded into W); accumulation and
# post-ops in f32.
# ----------------------------------------------------------------------------
def _fused_matmul_multi_k_kernel(x_ref, w_ref, shift_ref, *rest,
                                 apply_relu, has_residual):
    if has_residual:
        res_ref, o_ref, acc_ref = rest
    else:
        o_ref, acc_ref = rest

    @pl.when(pl.program_id(2) == 0)
    def _():
        acc_ref[...] = jnp.zeros_like(acc_ref)

    acc_ref[...] += jnp.dot(x_ref[...], w_ref[...],
                            preferred_element_type=jnp.float32)

    @pl.when(pl.program_id(2) == pl.num_programs(2) - 1)
    def _():
        y = acc_ref[...] + shift_ref[...]
        if has_residual:
            y = y + res_ref[...].astype(jnp.float32)
        if apply_relu:
            y = jnp.maximum(y, 0.0)
        o_ref[...] = y.astype(o_ref.dtype)


def _fused_matmul_single_k_kernel(x_ref, w_ref, shift_ref, *rest,
                                  apply_relu, has_residual):
    # Single K step: no accumulator scratch, no pl.when init/finalize.
    if has_residual:
        res_ref, o_ref = rest
    else:
        (o_ref,) = rest
    y = jnp.dot(x_ref[...], w_ref[...], preferred_element_type=jnp.float32)
    y = y + shift_ref[...]
    if has_residual:
        y = y + res_ref[...].astype(jnp.float32)
    if apply_relu:
        y = jnp.maximum(y, 0.0)
    o_ref[...] = y.astype(o_ref.dtype)


def fused_matmul_bn(x, w, shift, residual=None, relu=False,
                    out_dtype=jnp.float32):
    """x: (M, K), w: (K, N) with BN scale folded in, shift: (N,),
    residual: (M, N) or None.  Returns (M, N) in out_dtype."""
    M, K = x.shape
    N = w.shape[1]
    has_res = residual is not None
    out_bytes = np.dtype(out_dtype).itemsize

    # K handling: single-step kernel for K <= 1024 (covers every Bottleneck
    # layer of the CLIP ResNets except very wide inplanes); don't inflate a
    # small K to 128 -- only round to a sublane multiple.
    if K <= 1024:
        Kp = _round_up(K, 8)
        tk, nk = Kp, 1
    else:
        tk = 512
        Kp = _round_up(K, tk)
        nk = Kp // tk

    Mp = _round_up(M, 128)
    Np = _round_up(N, 128)

    tm = 128
    for cand in (512, 256):
        if Mp % cand == 0:
            tm = cand
            break

    def tile_bytes(tn_):
        b = 2 * tm * tk * 2            # X  (double-buffered, bf16)
        b += 2 * tk * tn_ * 2          # W  (bf16)
        b += 2 * tn_ * 4               # shift
        b += 2 * tm * tn_ * out_bytes  # out
        if has_res:
            b += 2 * tm * tn_ * 2      # residual (bf16)
        if nk > 1:
            b += tm * tn_ * 4          # f32 accumulator scratch
        return b

    # Full-N weight residency when it fits the VMEM budget (each X row tile
    # then streams from HBM exactly once), otherwise the largest divisor.
    tn = 128
    for cand in [Np] + [c for c in (2048, 1024, 512, 256)
                        if c < Np and Np % c == 0]:
        if tile_bytes(cand) <= _TILE_VMEM_BUDGET:
            tn = cand
            break

    n_m, n_n = Mp // tm, Np // tn
    # v7x has 2 TensorCores: prefer >= 2 parallel tiles when cheap to do so.
    if n_m * n_n == 1 and tm >= 256:
        tm //= 2
        n_m = Mp // tm

    # Operands: bf16 for the MXU, pad only when actually needed.
    xb = x.astype(jnp.bfloat16)
    if (Mp, Kp) != (M, K):
        xb = jnp.pad(xb, ((0, Mp - M), (0, Kp - K)))
    wb = w.astype(jnp.bfloat16)
    if (Kp, Np) != (K, N):
        wb = jnp.pad(wb, ((0, Kp - K), (0, Np - N)))
    sb = shift.astype(jnp.float32).reshape(1, N)
    if Np != N:
        sb = jnp.pad(sb, ((0, 0), (0, Np - N)))

    args = [xb, wb, sb]
    if has_res:
        rb = residual.astype(jnp.bfloat16)        # bf16 residual stream
        if (Mp, Np) != (M, N):
            rb = jnp.pad(rb, ((0, Mp - M), (0, Np - N)))
        args.append(rb)

    if nk == 1:
        kern = functools.partial(_fused_matmul_single_k_kernel,
                                 apply_relu=relu, has_residual=has_res)
        in_specs = [pl.BlockSpec((tm, Kp), lambda i, j: (i, 0)),
                    pl.BlockSpec((Kp, tn), lambda i, j: (0, j)),
                    pl.BlockSpec((1, tn), lambda i, j: (0, j))]
        if has_res:
            in_specs.append(pl.BlockSpec((tm, tn), lambda i, j: (i, j)))
        out_spec = pl.BlockSpec((tm, tn), lambda i, j: (i, j))
        grid = (n_m, n_n)
        scratch = []
        dims = ("parallel", "parallel")
    else:
        kern = functools.partial(_fused_matmul_multi_k_kernel,
                                 apply_relu=relu, has_residual=has_res)
        in_specs = [pl.BlockSpec((tm, tk), lambda i, j, k: (i, k)),
                    pl.BlockSpec((tk, tn), lambda i, j, k: (k, j)),
                    pl.BlockSpec((1, tn), lambda i, j, k: (0, j))]
        if has_res:
            in_specs.append(pl.BlockSpec((tm, tn), lambda i, j, k: (i, j)))
        out_spec = pl.BlockSpec((tm, tn), lambda i, j, k: (i, j))
        grid = (n_m, n_n, nk)
        scratch = [pltpu.VMEM((tm, tn), jnp.float32)]
        dims = ("parallel", "parallel", "arbitrary")

    # Actual streamed traffic: X re-read per N tile, W re-read per M tile.
    bytes_accessed = (xb.size * 2 * n_n + wb.size * 2 * n_m
                      + sb.size * 4 * n_m + Mp * Np * out_bytes)
    if has_res:
        bytes_accessed += Mp * Np * 2

    out = pl.pallas_call(
        kern,
        out_shape=jax.ShapeDtypeStruct((Mp, Np), out_dtype),
        grid=grid,
        in_specs=in_specs,
        out_specs=out_spec,
        scratch_shapes=scratch,
        compiler_params=pltpu.CompilerParams(
            dimension_semantics=dims,
            vmem_limit_bytes=_VMEM_LIMIT_BYTES),
        cost_estimate=pl.CostEstimate(
            flops=2 * M * N * K, transcendentals=0,
            bytes_accessed=int(bytes_accessed)),
    )(*args)
    return out[:M, :N]


# ----------------------------------------------------------------------------
# conv2 (3x3, pad=1, stride 1) + BN + ReLU as a single kernel:
# the padded NHWC activation is flattened to (positions, C) rows; each of the
# 9 taps (dy,dx) is a static row-offset slice of the per-image VMEM block and
# contributes one matmul accumulated in f32.  No materialized im2col.
# ----------------------------------------------------------------------------
def conv3x3_bn_relu(a, w9, shift):
    """a: (N, H, W, C) bf16; w9: (9, C, Cout) f32 (BN scale folded);
    shift: (Cout,) f32.  Returns (N, H, W, Cout) bf16."""
    N, H, W, C = a.shape
    Cout = w9.shape[-1]
    wp2 = W + 2
    npos = (H + 2) * wp2          # output computed in padded coordinates
    ext = W + 3                   # extra rows so every tap slice is in-bounds
    nxt = npos + 2 * ext

    xpad = jnp.pad(a, ((0, 0), (1, 1), (1, 1), (0, 0)))       # (N,H+2,W+2,C)
    xext = jnp.pad(xpad.reshape(N, npos, C), ((0, 0), (ext, ext), (0, 0)))
    w9b = w9.astype(jnp.bfloat16)
    sb = shift.astype(jnp.float32).reshape(1, Cout)

    # Row offset of tap (dy, dx): output position p reads input row
    # p + (dy-1)*(W+2) + (dx-1), shifted by `ext` into the extended buffer.
    offs = tuple((dy - 1) * wp2 + (dx - 1) + ext
                 for dy in range(3) for dx in range(3))

    def kernel(x_ref, w_ref, s_ref, o_ref):
        acc = jnp.zeros((npos, Cout), jnp.float32)
        for i, off in enumerate(offs):                 # unrolled: 9 taps
            xs = x_ref[off:off + npos, :]              # (npos, C) bf16
            acc = acc + jnp.dot(xs, w_ref[i],
                                preferred_element_type=jnp.float32)
        y = jnp.maximum(acc + s_ref[...], 0.0)
        o_ref[...] = y.astype(o_ref.dtype)

    out = pl.pallas_call(
        kernel,
        out_shape=jax.ShapeDtypeStruct((N, npos, Cout), jnp.bfloat16),
        grid=(N,),
        in_specs=[pl.BlockSpec((None, nxt, C), lambda n: (n, 0, 0)),
                  pl.BlockSpec((9, C, Cout), lambda n: (0, 0, 0)),
                  pl.BlockSpec((1, Cout), lambda n: (0, 0))],
        out_specs=pl.BlockSpec((None, npos, Cout), lambda n: (n, 0, 0)),
        compiler_params=pltpu.CompilerParams(
            dimension_semantics=("parallel",),
            vmem_limit_bytes=_VMEM_LIMIT_BYTES),
        cost_estimate=pl.CostEstimate(
            flops=2 * N * npos * 9 * C * Cout, transcendentals=0,
            bytes_accessed=int(xext.size * 2 + w9b.size * 2
                               + N * npos * Cout * 2)),
    )(xext, w9b, sb)

    # Crop the halo positions (garbage rows/cols of the padded output grid).
    return out.reshape(N, H + 2, wp2, Cout)[:, 1:H + 1, 1:W + 1, :]


# ----------------------------------------------------------------------------
# Parameter construction (deterministic, mirrors Bottleneck.__init__ shapes)
# ----------------------------------------------------------------------------
def init_bottleneck_params(key, inplanes, planes, stride):
    keys = jax.random.split(key, 8)

    def conv(k, cout, cin, kh, kw):
        fan_in = cin * kh * kw
        return jax.random.normal(k, (cout, cin, kh, kw), jnp.float32) * (
            1.0 / np.sqrt(fan_in))

    def bn(k, c):
        k1, k2, k3, k4 = jax.random.split(k, 4)
        return dict(
            gamma=1.0 + 0.1 * jax.random.normal(k1, (c,), jnp.float32),
            beta=0.1 * jax.random.normal(k2, (c,), jnp.float32),
            mean=0.1 * jax.random.normal(k3, (c,), jnp.float32),
            var=0.5 + jax.random.uniform(k4, (c,), jnp.float32),
        )

    p = dict(
        conv1=conv(keys[0], planes, inplanes, 1, 1), bn1=bn(keys[1], planes),
        conv2=conv(keys[2], planes, planes, 3, 3), bn2=bn(keys[3], planes),
        conv3=conv(keys[4], planes * EXPANSION, planes, 1, 1),
        bn3=bn(keys[5], planes * EXPANSION),
        stride=stride, inplanes=inplanes, planes=planes,
    )
    if stride > 1 or inplanes != planes * EXPANSION:
        p["conv_ds"] = conv(keys[6], planes * EXPANSION, inplanes, 1, 1)
        p["bn_ds"] = bn(keys[7], planes * EXPANSION)
    return p


def fold_bn(bnp, eps=1e-5):
    scale = bnp["gamma"] / jnp.sqrt(bnp["var"] + eps)
    shift = bnp["beta"] - bnp["mean"] * scale
    return scale, shift


def _avg_pool_nhwc(t, k):
    """stride-k average pool; mean in f32, result bf16 to feed the next MXU op."""
    if k == 1:
        return t.astype(jnp.bfloat16)
    n, h, w, c = t.shape
    p = t.astype(jnp.float32).reshape(n, h // k, k, w // k, k, c).mean(
        axis=(2, 4))
    return p.astype(jnp.bfloat16)


# ----------------------------------------------------------------------------
# Bottleneck forward: all conv / bn / relu / residual on Pallas kernels.
# Avg-pool and the NCHW<->NHWC transposes are cheap XLA glue.
# ----------------------------------------------------------------------------
def bottleneck_forward(params, x_nchw):
    stride = params["stride"]
    planes = params["planes"]
    N, Cin, H, W = x_nchw.shape
    assert H % stride == 0 and W % stride == 0, "H/W must divide the stride"

    x = jnp.transpose(x_nchw, (0, 2, 3, 1))               # NHWC f32
    x_bf = x.astype(jnp.bfloat16)

    # conv1 (1x1) + bn1 + relu -> bf16 activations for the next layer.
    s1, b1 = fold_bn(params["bn1"])
    w1 = params["conv1"][:, :, 0, 0].T * s1[None, :]       # (Cin, planes)
    a1 = fused_matmul_bn(x_bf.reshape(N * H * W, Cin), w1, b1,
                         relu=True, out_dtype=jnp.bfloat16)
    a1 = a1.reshape(N, H, W, planes)

    # conv2 (3x3, pad=1) + bn2 + relu — fused in-kernel 9-tap accumulation.
    s2, b2 = fold_bn(params["bn2"])
    w2 = jnp.transpose(params["conv2"], (2, 3, 1, 0)).reshape(
        9, planes, planes) * s2[None, None, :]
    a2 = conv3x3_bn_relu(a1, w2, b2)                       # (N,H,W,planes) bf16

    # avgpool(stride): cheap mem-bound reduction (f32 mean, bf16 result).
    Ho, Wo = H // stride, W // stride
    a2p = _avg_pool_nhwc(a2, stride)                       # (N,Ho,Wo,planes)

    # identity / downsample branch (avgpool + 1x1 conv + bn), bf16 residual.
    if "conv_ds" in params:
        sd, bd = fold_bn(params["bn_ds"])
        wd = params["conv_ds"][:, :, 0, 0].T * sd[None, :]  # (Cin, 4*planes)
        identity = fused_matmul_bn(
            _avg_pool_nhwc(x, stride).reshape(N * Ho * Wo, Cin), wd, bd,
            relu=False, out_dtype=jnp.bfloat16)
    else:
        identity = x_bf.reshape(N * H * W, Cin)

    # conv3 (1x1) + bn3 + residual add + relu, all fused in one kernel call.
    s3, b3 = fold_bn(params["bn3"])
    w3 = params["conv3"][:, :, 0, 0].T * s3[None, :]        # (planes, 4*planes)
    out = fused_matmul_bn(
        a2p.reshape(N * Ho * Wo, planes), w3, b3,
        residual=identity, relu=True, out_dtype=jnp.float32)

    out = out.reshape(N, Ho, Wo, planes * EXPANSION)
    return jnp.transpose(out, (0, 3, 1, 2))                 # back to NCHW


# ----------------------------------------------------------------------------
# Plain-JAX reference (mirrors the PyTorch module, inference-mode BN, f32)
# ----------------------------------------------------------------------------
def reference_forward(params, x):
    eps = 1e-5

    def conv(t, w, padding=0):
        return jax.lax.conv_general_dilated(
            t, w, (1, 1), [(padding, padding)] * 2,
            dimension_numbers=("NCHW", "OIHW", "NCHW"))

    def bn(t, p):
        s = p["gamma"] / jnp.sqrt(p["var"] + eps)
        return (t - p["mean"][None, :, None, None]) * s[None, :, None, None] \
            + p["beta"][None, :, None, None]

    def avgpool(t, kk):
        if kk == 1:
            return t
        n, c, h, w = t.shape
        return t.reshape(n, c, h // kk, kk, w // kk, kk).mean(axis=(3, 5))

    stride = params["stride"]
    out = jax.nn.relu(bn(conv(x, params["conv1"]), params["bn1"]))
    out = jax.nn.relu(bn(conv(out, params["conv2"], padding=1), params["bn2"]))
    out = avgpool(out, stride)
    out = bn(conv(out, params["conv3"]), params["bn3"])
    if "conv_ds" in params:
        identity = bn(conv(avgpool(x, stride), params["conv_ds"]),
                      params["bn_ds"])
    else:
        identity = x
    return jax.nn.relu(out + identity)


if __name__ == "__main__":
    key = jax.random.PRNGKey(0)
    kx, kp = jax.random.split(key)

    N, inplanes, H, W = 2, 8, 16, 16
    planes, stride = 4, 2

    x = jax.random.normal(kx, (N, inplanes, H, W), jnp.float32)
    params = init_bottleneck_params(kp, inplanes, planes, stride)

    out = jax.block_until_ready(bottleneck_forward(params, x))
    ref = jax.block_until_ready(reference_forward(params, x))

    assert out.shape == (N, planes * EXPANSION, H // stride, W // stride), \
        out.shape
    err = float(jnp.max(jnp.abs(out - ref)))
    # bf16 MXU operands / bf16 residual with f32 accumulation: loose bound.
    assert err < 1e-1, f"max abs error too large: {err}"

    print("KERNEL_OK")
</pallas_src>

<mosaic_0001>
module attributes {stable_mosaic.version = 11 : i64} {
  func.func @_fused_matmul_single_k_kernel(%arg0: i32, %arg1: i32, %arg2: memref<256x8xbf16, #tpu.memory_space<vmem>>, %arg3: memref<8x128xbf16, #tpu.memory_space<vmem>>, %arg4: memref<1x128xf32, #tpu.memory_space<vmem>>, %arg5: memref<256x128xbf16, #tpu.memory_space<vmem>>) attributes {dimension_semantics = [#tpu.dimension_semantics<parallel>, #tpu.dimension_semantics<parallel>], iteration_bounds = array<i64: 2, 1>, scalar_prefetch = 0 : i64, scratch_operands = 0 : i64, tpu.core_type = #tpu.core_type<tc>, window_params = [{transform_indices = @transform_0, window_bounds = array<i64: 256, 8>}, {transform_indices = @transform_1, window_bounds = array<i64: 8, 128>}, {transform_indices = @transform_2, window_bounds = array<i64: 1, 128>}, {transform_indices = @transform_3, window_bounds = array<i64: 256, 128>}]} {
    %c0 = arith.constant 0 : index
    %c0_0 = arith.constant 0 : index
    %0 = vector.load %arg2[%c0, %c0_0] : memref<256x8xbf16, #tpu.memory_space<vmem>>, vector<256x8xbf16>
    %c0_1 = arith.constant 0 : index
    %c0_2 = arith.constant 0 : index
    %1 = vector.load %arg3[%c0_1, %c0_2] : memref<8x128xbf16, #tpu.memory_space<vmem>>, vector<8x128xbf16>
    %cst = arith.constant dense<0.000000e+00> : vector<256x128xf32>
    %2 = tpu.matmul %0, %1, %cst {dimension_numbers = #tpu.dot_dimension_numbers<[1], [0], [0], [1], [0, 0, 1, 1], [], []>} : vector<256x8xbf16>, vector<8x128xbf16>, vector<256x128xf32> -> vector<256x128xf32>
    %c0_3 = arith.constant 0 : index
    %c0_4 = arith.constant 0 : index
    %3 = vector.load %arg4[%c0_3, %c0_4] : memref<1x128xf32, #tpu.memory_space<vmem>>, vector<1x128xf32>
    %4 = vector.broadcast %3 : vector<1x128xf32> to vector<256x128xf32>
    %5 = arith.addf %2, %4 : vector<256x128xf32>
    %cst_5 = arith.constant 0.000000e+00 : f32
    %6 = vector.broadcast %cst_5 : f32 to vector<256x128xf32>
    %7 = arith.maximumf %5, %6 : vector<256x128xf32>
    %8 = arith.truncf %7 : vector<256x128xf32> to vector<256x128xbf16>
    %c0_6 = arith.constant 0 : index
    %c0_7 = arith.constant 0 : index
    %9 = vector.load %arg5[%c0_6, %c0_7] : memref<256x128xbf16, #tpu.memory_space<vmem>>, vector<256x128xbf16>
    tpu.vector_store %arg5[%c0_6, %c0_7], %8 {strides = array<i32>} : memref<256x128xbf16, #tpu.memory_space<vmem>>, vector<256x128xbf16>,
    return
  }
  func.func @transform_0(%arg0: i32, %arg1: i32) -> (i32, i32) {
    %c0_i32 = arith.constant 0 : i32
    %c0_i32_0 = arith.constant 0 : i32
    return %arg0, %c0_i32 : i32, i32
  }
  func.func @transform_1(%arg0: i32, %arg1: i32) -> (i32, i32) {
    %c0_i32 = arith.constant 0 : i32
    %c0_i32_0 = arith.constant 0 : i32
    return %c0_i32, %arg1 : i32, i32
  }
  func.func @transform_2(%arg0: i32, %arg1: i32) -> (i32, i32) {
    %c0_i32 = arith.constant 0 : i32
    %c0_i32_0 = arith.constant 0 : i32
    return %c0_i32, %arg1 : i32, i32
  }
  func.func @transform_3(%arg0: i32, %arg1: i32) -> (i32, i32) {
    %c0_i32 = arith.constant 0 : i32
    return %arg0, %arg1 : i32, i32
  }
}

</mosaic_0001>

<llo_original>
// kernel: tpu_custom_call.1
$region0: #{tpu_custom_call.1}
  #allocation0 [shape = 'u32[]', space=smem, size = 0x4, offset = 0x4, fixed_abs, tag = 'smem constant byte address 0x4 - core index']
  #allocation1 [shape = 'u32[144,128]{1,0:T(1,128)}', space=vmem, size = 0x12000, scoped, tag = 'internal scratch']
  %s0 = inlined_call_operand.vmem [shape: bf16[512,8], index: 0, kind: input, shape index: {}]
  %s1 = inlined_call_operand.vmem [shape: bf16[8,128], index: 1, kind: input, shape index: {}]
  %s2 = inlined_call_operand.vmem [shape: f32[1,128], index: 2, kind: input, shape index: {}]
  %s3 = inlined_call_operand.hbm [shape: bf16[512,128], index: 3, kind: output, shape index: {}]
  %s4 = sld [smem:[#allocation0]]
  $region45: #{tpu_custom_call.1} parent=0
    _
  %s6 = ssub.s32 1, %s4
  %s7 = scalar_select 0, %s6, %s4
  $region1: #{tpu_custom_call.1} parent=0
    #allocation2 [shape = 'u8[131072]{0}', space=vmem, size = 0x20000, scoped, tag = 'output window, operand 0']
    #allocation3 [shape = 's32[2]{0}', space=sflag, size = 0x8, scoped, tag = 'scoped memory for tpu_custom_call.1']
    %8 = vsyncpa [#allocation3], 0
    %s9 = scalar_lea.sflag [#allocation3], 1
    %10 = vsyncpa %s9, 0
    loop: start=0, step=1, limit=4
    $region2: #{tpu_custom_call.1} parent=1 // loop_pre_header
      _
    $region3: #{tpu_custom_call.1} parent=1 // loop_header
      %s12 = sphi 0, %s16
      %p13 = scmp.ge.s32.totalorder %s12, 4
      %s19 = sphi 0, %s31
      %s20 = sphi 0, %s27
      %s21 = sphi 0, %s19
      %s22 = sphi 0, %s20
      %s23 = sphi 0, %s21
      %s24 = sphi 0, %s22
      %s34 = sphi 0, %s36
      %s37 = sphi 0, %s34
      %s38 = sphi 0, %s37
      %s54 = sphi 0, %s38
      %s60 = sphi 0, %s62
      %s63 = sphi 0, %s60
      %s64 = sphi 0, %s63
      %s80 = sphi 0, %s64
      %s86 = sphi 0, %s88
      %s89 = sphi 0, %s86
      %s90 = sphi 0, %s89
      %s106 = sphi 0, %s90
      %s114 = sphi 0, %s116
      %s117 = sphi 0, %s114
      %s118 = sphi 0, %s117
      %s134 = sphi 0, %s118
    $region4: #{tpu_custom_call.1} parent=1 // loop_header_branch
      %15 = sbr.rel (%p13) target = $region8
    $region5: #{tpu_custom_call.1} parent=1 // loop_body
      %s17 = ssub.s32 %s12, 1
      %s18 = ssub.s32 %s12, 2
      %s25 = sadd.s32 1, %s20
      %p26 = scmp.ge.s32.totalorder %s25, 1
      %s27 = scalar_select %p26, 0, %s25
      %s28 = sadd.s32 1, %s19
      %s29 = scalar_select %p26, %s28, %s19
      %p30 = scmp.ge.s32.totalorder %s29, 2
      %s31 = scalar_select %p30, 0, %s29
      %s32 = ssub.s32 %s19, %s31
      %p33 = scmp.eq.s32.totalorder %s32, 0
      %s35 = sadd.s32 %s34, 1
      %s36 = scalar_select %p33, %s34, %s35
      %p39 = pneg %p33
      %p40 = scmp.eq.s32.totalorder %s12, 1
      %p41 = por %p39, %p40
      %p42 = scmp.ne.s32.totalorder %s34, %s37
      %p43 = scmp.eq.s32.totalorder %s12, 0
      %p44 = por %p42, %p43
      %p45 = scmp.ne.s32.totalorder %s34, %s37
      %p46 = scmp.eq.s32.totalorder %s17, 1
      %p47 = por %p45, %p46
      %p48 = scmp.ne.s32.totalorder %s37, %s38
      %p49 = scmp.eq.s32.totalorder %s17, 0
      %p50 = por %p48, %p49
      %p51 = scmp.ne.s32.totalorder %s37, %s38
      %p52 = scmp.eq.s32.totalorder %s18, 1
      %p53 = por %p51, %p52
      %p55 = scmp.ne.s32.totalorder %s38, %s54
      %p56 = scmp.eq.s32.totalorder %s18, 0
      %p57 = por %p55, %p56
      %s58 = ssub.s32 %s20, %s27
      %p59 = scmp.eq.s32.totalorder %s58, 0
      %s61 = sadd.s32 %s60, 1
      %s62 = scalar_select %p59, %s60, %s61
      %p65 = pneg %p59
      %p66 = scmp.eq.s32.totalorder %s12, 1
      %p67 = por %p65, %p66
      %p68 = scmp.ne.s32.totalorder %s60, %s63
      %p69 = scmp.eq.s32.totalorder %s12, 0
      %p70 = por %p68, %p69
      %p71 = scmp.ne.s32.totalorder %s60, %s63
      %p72 = scmp.eq.s32.totalorder %s17, 1
      %p73 = por %p71, %p72
      %p74 = scmp.ne.s32.totalorder %s63, %s64
      %p75 = scmp.eq.s32.totalorder %s17, 0
      %p76 = por %p74, %p75
      %p77 = scmp.ne.s32.totalorder %s63, %s64
      %p78 = scmp.eq.s32.totalorder %s18, 1
      %p79 = por %p77, %p78
      %p81 = scmp.ne.s32.totalorder %s64, %s80
      %p82 = scmp.eq.s32.totalorder %s18, 0
      %p83 = por %p81, %p82
      %s84 = ssub.s32 %s20, %s27
      %p85 = scmp.eq.s32.totalorder %s84, 0
      %s87 = sadd.s32 %s86, 1
      %s88 = scalar_select %p85, %s86, %s87
      %p91 = pneg %p85
      %p92 = scmp.eq.s32.totalorder %s12, 1
      %p93 = por %p91, %p92
      %p94 = scmp.ne.s32.totalorder %s86, %s89
      %p95 = scmp.eq.s32.totalorder %s12, 0
      %p96 = por %p94, %p95
      %p97 = scmp.ne.s32.totalorder %s86, %s89
      %p98 = scmp.eq.s32.totalorder %s17, 1
      %p99 = por %p97, %p98
      %p100 = scmp.ne.s32.totalorder %s89, %s90
      %p101 = scmp.eq.s32.totalorder %s17, 0
      %p102 = por %p100, %p101
      %p103 = scmp.ne.s32.totalorder %s89, %s90
      %p104 = scmp.eq.s32.totalorder %s18, 1
      %p105 = por %p103, %p104
      %p107 = scmp.ne.s32.totalorder %s90, %s106
      %p108 = scmp.eq.s32.totalorder %s18, 0
      %p109 = por %p107, %p108
      %s110 = ssub.s32 %s19, %s31
      %s111 = ssub.s32 %s20, %s27
      %s112 = sor.u32 %s110, %s111
      %p113 = scmp.eq.s32.totalorder %s112, 0
      %s115 = sadd.s32 %s114, 1
      %s116 = scalar_select %p113, %s114, %s115
      %p119 = pneg %p113
      %p120 = scmp.eq.s32.totalorder %s12, 1
      %p121 = por %p119, %p120
      %p122 = scmp.ne.s32.totalorder %s114, %s117
      %p123 = scmp.eq.s32.totalorder %s12, 0
      %p124 = por %p122, %p123
      %p125 = scmp.ne.s32.totalorder %s114, %s117
      %p126 = scmp.eq.s32.totalorder %s17, 1
      %p127 = por %p125, %p126
      %p128 = scmp.ne.s32.totalorder %s117, %s118
      %p129 = scmp.eq.s32.totalorder %s17, 0
      %p130 = por %p128, %p129
      %p131 = scmp.ne.s32.totalorder %s117, %s118
      %p132 = scmp.eq.s32.totalorder %s18, 1
      %p133 = por %p131, %p132
      %p135 = scmp.ne.s32.totalorder %s118, %s134
      %p136 = scmp.eq.s32.totalorder %s18, 0
      %p137 = por %p135, %p136
      %p138 = scmp.le.s32.totalorder 1, %s12
      %p139 = scmp.lt.s32.totalorder %s12, 3
      %p140 = pnand %p138, %p139
      %p141 = pneg %p140
      // Predicated region
      $region9: #{tpu_custom_call.1} parent=5 // pred_check
        _
      $region10: #{tpu_custom_call.1} parent=5 // pred_check_branch
        %143 = sbr.rel (%p140) target = $region12
      $region11: #{tpu_custom_call.1} parent=5 // pred_region
        %s144 = ssub.s32 %s12, 1
        // Predicated region
        $region13: #{tpu_custom_call.1} parent=11 // pred_check
          %p145 = pneg %p76
        $region14: #{tpu_custom_call.1} parent=11 // pred_check_branch
          %147 = sbr.rel (%p145) target = $region16
        $region15: #{tpu_custom_call.1} parent=11 // pred_region
          %p148 = scmp.lt.s32.totalorder %s22, 0
          %s149 = scalar_select %p148, %s22, 0
          %s150 = smul.addr %s149, 4
          %s151 = scalar_lea.vmem %s1, %s150
        $region16: #{tpu_custom_call.1} parent=11 // pred_fallthru
          _
        // Predicated region
        $region17: #{tpu_custom_call.1} parent=11 // pred_check
          %p152 = pneg %p102
        $region18: #{tpu_custom_call.1} parent=11 // pred_check_branch
          %154 = sbr.rel (%p152) target = $region20
        $region19: #{tpu_custom_call.1} parent=11 // pred_region
          %p155 = scmp.lt.s32.totalorder %s22, 0
          %s156 = scalar_select %p155, %s22, 0
          %s157 = scalar_lea.vmem %s2, %s156
        $region20: #{tpu_custom_call.1} parent=11 // pred_fallthru
          _
      $region12: #{tpu_custom_call.1} parent=5 // pred_fallthru
        _
      %p158 = scmp.lt.s32.totalorder %s12, 2
      // Predicated region
      $region21: #{tpu_custom_call.1} parent=5 // pred_check
        %p159 = pneg %p158
      $region22: #{tpu_custom_call.1} parent=5 // pred_check_branch
        %161 = sbr.rel (%p159) target = $region24
      $region23: #{tpu_custom_call.1} parent=5 // pred_region
        // Predicated region
        $region25: #{tpu_custom_call.1} parent=23 // pred_check
          %p162 = pneg %p44
        $region26: #{tpu_custom_call.1} parent=23 // pred_check_branch
          %164 = sbr.rel (%p162) target = $region28
        $region27: #{tpu_custom_call.1} parent=23 // pred_region
          %s165 = smul.u32 32, %s19
          %p166 = scmp.lt.s32.totalorder %s165, 63
          %s167 = scalar_select %p166, %s165, 63
          %s168 = smul.addr %s167, 4
          %s169 = scalar_lea.vmem %s0, %s168
          %s170 = smul.u32 32, %s19
        $region28: #{tpu_custom_call.1} parent=23 // pred_fallthru
          _
      $region24: #{tpu_custom_call.1} parent=5 // pred_fallthru
        _
      %p171 = scmp.le.s32.totalorder 1, %s12
      %p172 = scmp.lt.s32.totalorder %s12, 3
      %p173 = pnand %p171, %p172
      %p174 = pneg %p173
      // Predicated region
      $region29: #{tpu_custom_call.1} parent=5 // pred_check
        _
      $region30: #{tpu_custom_call.1} parent=5 // pred_check_branch
        %176 = sbr.rel (%p173) target = $region32
      $region31: #{tpu_custom_call.1} parent=5 // pred_region
        %s177 = ssub.s32 %s12, 1
        %s178 = smul.u32 32, %s21
        %p179 = scmp.lt.s32.totalorder %s178, 63
        %s180 = scalar_select %p179, %s178, 63
        %s181 = smul.addr %s180, 4
        %s182 = scalar_lea.vmem %s0, %s181
        %p183 = pneg %p50
        %p184 = pneg %p47
        %p185 = scmp.lt.s32.totalorder %s22, 0
        %s186 = scalar_select %p185, %s22, 0
        %s187 = smul.addr %s186, 4
        %s188 = scalar_lea.vmem %s1, %s187
        %p189 = pneg %p76
        %p190 = pneg %p73
        %p191 = scmp.lt.s32.totalorder %s22, 0
        %s192 = scalar_select %p191, %s22, 0
        %s193 = scalar_lea.vmem %s2, %s192
        %p194 = pneg %p102
        %p195 = pneg %p99
        %p196 = pneg %p130
        %p197 = pneg %p127
        %s198 = sand.u32 %s117, 1
        %s199 = scalar_lea.sflag [#allocation3], %s198
        %s200 = sand.u32 %s117, 1
        %s201 = smul.addr %s200, 128
        %s202 = scalar_lea.vmem [#allocation2], %s201
        %s203 = smul.u32 32, %s21
        %p204 = scmp.lt.s32.totalorder %s203, 63
        %s205 = scalar_select %p204, %s203, 63
        %s206 = smul.addr %s205, 4
        %s207 = scalar_lea.vmem %s0, %s206
        %s208 = smul.u32 32, %s21
        %p209 = scmp.lt.s32.totalorder %s22, 0
        %s210 = scalar_select %p209, %s22, 0
        %s211 = smul.addr %s210, 4
        %s212 = scalar_lea.vmem %s1, %s211
        %p213 = scmp.lt.s32.totalorder %s22, 0
        %s214 = scalar_select %p213, %s22, 0
        %s215 = scalar_lea.vmem %s2, %s214
        %s216 = smul.u32 32, %s21
        %v218 = vld [vmem:[%s207] sm:$0xf]
        %v219 = vld [vmem:[%s207 + $0x4] sm:$0xf]
        %v220 = vld [vmem:[%s207 + $0x8] sm:$0xf]
        %v221 = vld [vmem:[%s207 + $0xc] sm:$0xf]
        %v222 = vld [vmem:[%s207 + $0x10] sm:$0xf]
        %v223 = vld [vmem:[%s207 + $0x14] sm:$0xf]
        %v224 = vld [vmem:[%s207 + $0x18] sm:$0xf]
        %v225 = vld [vmem:[%s207 + $0x1c] sm:$0xf]
        %v226 = vld [vmem:[%s207 + $0x20] sm:$0xf]
        %v227 = vld [vmem:[%s207 + $0x24] sm:$0xf]
        %v228 = vld [vmem:[%s207 + $0x28] sm:$0xf]
        %v229 = vld [vmem:[%s207 + $0x2c] sm:$0xf]
        %v230 = vld [vmem:[%s207 + $0x30] sm:$0xf]
        %v231 = vld [vmem:[%s207 + $0x34] sm:$0xf]
        %v232 = vld [vmem:[%s207 + $0x38] sm:$0xf]
        %v233 = vld [vmem:[%s207 + $0x3c] sm:$0xf]
        %v234 = vld [vmem:[%s207 + $0x40] sm:$0xf]
        %v235 = vld [vmem:[%s207 + $0x44] sm:$0xf]
        %v236 = vld [vmem:[%s207 + $0x48] sm:$0xf]
        %v237 = vld [vmem:[%s207 + $0x4c] sm:$0xf]
        %v238 = vld [vmem:[%s207 + $0x50] sm:$0xf]
        %v239 = vld [vmem:[%s207 + $0x54] sm:$0xf]
        %v240 = vld [vmem:[%s207 + $0x58] sm:$0xf]
        %v241 = vld [vmem:[%s207 + $0x5c] sm:$0xf]
        %v242 = vld [vmem:[%s207 + $0x60] sm:$0xf]
        %v243 = vld [vmem:[%s207 + $0x64] sm:$0xf]
        %v244 = vld [vmem:[%s207 + $0x68] sm:$0xf]
        %v245 = vld [vmem:[%s207 + $0x6c] sm:$0xf]
        %v246 = vld [vmem:[%s207 + $0x70] sm:$0xf]
        %v247 = vld [vmem:[%s207 + $0x74] sm:$0xf]
        %v248 = vld [vmem:[%s207 + $0x78] sm:$0xf]
        %v249 = vld [vmem:[%s207 + $0x7c] sm:$0xf]
        %v250 = vld [vmem:[%s212] sm:$0xf]
        %v251 = vld [vmem:[%s215] sm:$0x1]
        %v253 = vlaneseq
        %v254 = vshrl.u32 %v253, 7
        %v255 = vsub.s32 0, %v254
        %v256 = vrot.slane %v251, %v255
        %v290 = vunpack.c.l.b16 %v218
        %v291 = vunpack.c.l.b16 %v219
        %v292 = vunpack.c.l.b16 %v220
        %v293 = vunpack.c.l.b16 %v221
        %v294 = vunpack.c.l.b16 %v222
        %v295 = vunpack.c.l.b16 %v223
        %v296 = vunpack.c.l.b16 %v224
        %v297 = vunpack.c.l.b16 %v225
        %v298 = vunpack.c.l.b16 %v226
        %v299 = vunpack.c.l.b16 %v227
        %v300 = vunpack.c.l.b16 %v228
        %v301 = vunpack.c.l.b16 %v229
        %v302 = vunpack.c.l.b16 %v230
        %v303 = vunpack.c.l.b16 %v231
        %v304 = vunpack.c.l.b16 %v232
        %v305 = vunpack.c.l.b16 %v233
        %v306 = vunpack.c.l.b16 %v234
        %v307 = vunpack.c.l.b16 %v235
        %v308 = vunpack.c.l.b16 %v236
        %v309 = vunpack.c.l.b16 %v237
        %v310 = vunpack.c.l.b16 %v238
        %v311 = vunpack.c.l.b16 %v239
        %v312 = vunpack.c.l.b16 %v240
        %v313 = vunpack.c.l.b16 %v241
        %v314 = vunpack.c.l.b16 %v242
        %v315 = vunpack.c.l.b16 %v243
        %v316 = vunpack.c.l.b16 %v244
        %v317 = vunpack.c.l.b16 %v245
        %v318 = vunpack.c.l.b16 %v246
        %v319 = vunpack.c.l.b16 %v247
        %v320 = vunpack.c.l.b16 %v248
        %v321 = vunpack.c.l.b16 %v249
        %v322 = vpack.c.b16 %v291, %v290
        %v323 = vpack.c.b16 %v293, %v292
        %v324 = vpack.c.b16 %v295, %v294
        %v325 = vpack.c.b16 %v297, %v296
        %v326 = vpack.c.b16 %v299, %v298
        %v327 = vpack.c.b16 %v301, %v300
        %v328 = vpack.c.b16 %v303, %v302
        %v329 = vpack.c.b16 %v305, %v304
        %v330 = vpack.c.b16 %v307, %v306
        %v331 = vpack.c.b16 %v309, %v308
        %v332 = vpack.c.b16 %v311, %v310
        %v333 = vpack.c.b16 %v313, %v312
        %v334 = vpack.c.b16 %v315, %v314
        %v335 = vpack.c.b16 %v317, %v316
        %v336 = vpack.c.b16 %v319, %v318
        %v337 = vpack.c.b16 %v321, %v320
        %vm338 = vcmask 64512
        %v340 = vsel %vm338, %v322, 0
        %v343 = vsel %vm338, %v323, 0
        %v346 = vsel %vm338, %v324, 0
        %v349 = vsel %vm338, %v325, 0
        %v352 = vsel %vm338, %v326, 0
        %v355 = vsel %vm338, %v327, 0
        %v358 = vsel %vm338, %v328, 0
        %v361 = vsel %vm338, %v329, 0
        %v364 = vsel %vm338, %v330, 0
        %v367 = vsel %vm338, %v331, 0
        %v370 = vsel %vm338, %v332, 0
        %v373 = vsel %vm338, %v333, 0
        %v376 = vsel %vm338, %v334, 0
        %v379 = vsel %vm338, %v335, 0
        %v382 = vsel %vm338, %v336, 0
        %v385 = vsel %vm338, %v337, 0
        %vm387 = vcmask 1043456
        %v389 = vsel %vm387, %v250, 0
        %391 = vmatprep.subr.bf16.mxu0 0
        %392 = vmatpush1.bf16.msra.mxu0 %v389
        %393 = vmatprep.subr.bf16.mxu0 0
        %394 = vmatpush1.bf16.msra.mxu0 0
        %395 = vmatprep.subr.bf16.mxu0 0
        %396 = vmatpush1.bf16.msra.mxu0 0
        %397 = vmatprep.subr.bf16.mxu0 0
        %398 = vmatpush1.bf16.msra.mxu0 0
        %399 = vmatprep.subr.bf16.mxu0 0
        %400 = vmatpush1.bf16.msra.mxu0 0
        %401 = vmatprep.subr.bf16.mxu0 0
        %402 = vmatpush1.bf16.msra.mxu0 0
        %403 = vmatprep.subr.bf16.mxu0 0
        %404 = vmatpush1.bf16.msra.mxu0 0
        %405 = vmatprep.subr.bf16.mxu0 0
        %406 = vmatpush1.bf16.msra.mxu0 0
        %407 = vmatprep.subr.bf16.mxu0 0
        %408 = vmatpush1.bf16.msra.mxu0 0
        %409 = vmatprep.subr.bf16.mxu0 0
        %410 = vmatpush1.bf16.msra.mxu0 0
        %411 = vmatprep.subr.bf16.mxu0 0
        %412 = vmatpush1.bf16.msra.mxu0 0
        %413 = vmatprep.subr.bf16.mxu0 0
        %414 = vmatpush1.bf16.msra.mxu0 0
        %415 = vmatprep.subr.bf16.mxu0 0
        %416 = vmatpush1.bf16.msra.mxu0 0
        %417 = vmatprep.subr.bf16.mxu0 0
        %418 = vmatpush1.bf16.msra.mxu0 0
        %419 = vmatprep.subr.bf16.mxu0 0
        %420 = vmatpush1.bf16.msra.mxu0 0
        %421 = vmatprep.subr.bf16.mxu0 0
        %422 = vmatpush1.bf16.msra.mxu0 0
        %423 = vmatprep.mubr.bf16.mxu0 0
        %424 = vmatmul.mubr.bf16.gmra.mrb[0].mxu0 %v340
        %v425 = vpop.f32.mrb[0].mxu0
        %v426 = vadd.f32 %v256, %v425
        %v427 = vpop.f32.mrb[0].mxu0
        %v428 = vpop.f32.mrb[0].mxu0
        %v429 = vadd.f32 %v256, %v428
        %v430 = vpop.f32.mrb[0].mxu0
        %431 = vmatprep.mubr.bf16.mxu0 0
        %432 = vmatmul.mubr.bf16.gmra.mrb[0].mxu0 %v343
        %v433 = vpop.f32.mrb[0].mxu0
        %v434 = vadd.f32 %v256, %v433
        %v435 = vpop.f32.mrb[0].mxu0
        %v436 = vpop.f32.mrb[0].mxu0
        %v437 = vadd.f32 %v256, %v436
        %v438 = vpop.f32.mrb[0].mxu0
        %439 = vmatprep.mubr.bf16.mxu0 0
        %440 = vmatmul.mubr.bf16.gmra.mrb[0].mxu0 %v346
        %v441 = vpop.f32.mrb[0].mxu0
        %v442 = vadd.f32 %v256, %v441
        %v443 = vpop.f32.mrb[0].mxu0
        %v444 = vpop.f32.mrb[0].mxu0
        %v445 = vadd.f32 %v256, %v444
        %v446 = vpop.f32.mrb[0].mxu0
        %447 = vmatprep.mubr.bf16.mxu0 0
        %448 = vmatmul.mubr.bf16.gmra.mrb[0].mxu0 %v349
        %v449 = vpop.f32.mrb[0].mxu0
        %v450 = vadd.f32 %v256, %v449
        %v451 = vpop.f32.mrb[0].mxu0
        %v452 = vpop.f32.mrb[0].mxu0
        %v453 = vadd.f32 %v256, %v452
        %v454 = vpop.f32.mrb[0].mxu0
        %455 = vmatprep.mubr.bf16.mxu0 0
        %456 = vmatmul.mubr.bf16.gmra.mrb[0].mxu0 %v352
        %v457 = vpop.f32.mrb[0].mxu0
        %v458 = vadd.f32 %v256, %v457
        %v459 = vpop.f32.mrb[0].mxu0
        %v460 = vpop.f32.mrb[0].mxu0
        %v461 = vadd.f32 %v256, %v460
        %v462 = vpop.f32.mrb[0].mxu0
        %463 = vmatprep.mubr.bf16.mxu0 0
        %464 = vmatmul.mubr.bf16.gmra.mrb[0].mxu0 %v355
        %v465 = vpop.f32.mrb[0].mxu0
        %v466 = vadd.f32 %v256, %v465
        %v467 = vpop.f32.mrb[0].mxu0
        %v468 = vpop.f32.mrb[0].mxu0
        %v469 = vadd.f32 %v256, %v468
        %v470 = vpop.f32.mrb[0].mxu0
        %471 = vmatprep.mubr.bf16.mxu0 0
        %472 = vmatmul.mubr.bf16.gmra.mrb[0].mxu0 %v358
        %v473 = vpop.f32.mrb[0].mxu0
        %v474 = vadd.f32 %v256, %v473
        %v475 = vpop.f32.mrb[0].mxu0
        %v476 = vpop.f32.mrb[0].mxu0
        %v477 = vadd.f32 %v256, %v476
        %v478 = vpop.f32.mrb[0].mxu0
        %479 = vmatprep.mubr.bf16.mxu0 0
        %480 = vmatmul.mubr.bf16.gmra.mrb[0].mxu0 %v361
        %v481 = vpop.f32.mrb[0].mxu0
        %v482 = vadd.f32 %v256, %v481
        %v483 = vpop.f32.mrb[0].mxu0
        %v484 = vpop.f32.mrb[0].mxu0
        %v485 = vadd.f32 %v256, %v484
        %v486 = vpop.f32.mrb[0].mxu0
        %487 = vmatprep.mubr.bf16.mxu0 0
        %488 = vmatmul.mubr.bf16.gmra.mrb[0].mxu0 %v364
        %v489 = vpop.f32.mrb[0].mxu0
        %v490 = vadd.f32 %v256, %v489
        %v491 = vpop.f32.mrb[0].mxu0
        %v492 = vpop.f32.mrb[0].mxu0
        %v493 = vadd.f32 %v256, %v492
        %v494 = vpop.f32.mrb[0].mxu0
        %495 = vmatprep.mubr.bf16.mxu0 0
        %496 = vmatmul.mubr.bf16.gmra.mrb[0].mxu0 %v367
        %v497 = vpop.f32.mrb[0].mxu0
        %v498 = vadd.f32 %v256, %v497
        %v499 = vpop.f32.mrb[0].mxu0
        %v500 = vpop.f32.mrb[0].mxu0
        %v501 = vadd.f32 %v256, %v500
        %v502 = vpop.f32.mrb[0].mxu0
        %503 = vmatprep.mubr.bf16.mxu0 0
        %504 = vmatmul.mubr.bf16.gmra.mrb[0].mxu0 %v370
        %v505 = vpop.f32.mrb[0].mxu0
        %v506 = vadd.f32 %v256, %v505
        %v507 = vpop.f32.mrb[0].mxu0
        %v508 = vpop.f32.mrb[0].mxu0
        %v509 = vadd.f32 %v256, %v508
        %v510 = vpop.f32.mrb[0].mxu0
        %511 = vmatprep.mubr.bf16.mxu0 0
        %512 = vmatmul.mubr.bf16.gmra.mrb[0].mxu0 %v373
        %v513 = vpop.f32.mrb[0].mxu0
        %v514 = vadd.f32 %v256, %v513
        %v515 = vpop.f32.mrb[0].mxu0
        %v516 = vpop.f32.mrb[0].mxu0
        %v517 = vadd.f32 %v256, %v516
        %v518 = vpop.f32.mrb[0].mxu0
        %519 = vmatprep.mubr.bf16.mxu0 0
        %520 = vmatmul.mubr.bf16.gmra.mrb[0].mxu0 %v376
        %v521 = vpop.f32.mrb[0].mxu0
        %v522 = vadd.f32 %v256, %v521
        %v523 = vpop.f32.mrb[0].mxu0
        %v524 = vpop.f32.mrb[0].mxu0
        %v525 = vadd.f32 %v256, %v524
        %v526 = vpop.f32.mrb[0].mxu0
        %527 = vmatprep.mubr.bf16.mxu0 0
        %528 = vmatmul.mubr.bf16.gmra.mrb[0].mxu0 %v379
        %v529 = vpop.f32.mrb[0].mxu0
        %v530 = vadd.f32 %v256, %v529
        %v531 = vpop.f32.mrb[0].mxu0
        %v532 = vpop.f32.mrb[0].mxu0
        %v533 = vadd.f32 %v256, %v532
        %v534 = vpop.f32.mrb[0].mxu0
        %535 = vmatprep.mubr.bf16.mxu0 0
        %536 = vmatmul.mubr.bf16.gmra.mrb[0].mxu0 %v382
        %v537 = vpop.f32.mrb[0].mxu0
        %v538 = vadd.f32 %v256, %v537
        %v539 = vpop.f32.mrb[0].mxu0
        %v540 = vpop.f32.mrb[0].mxu0
        %v541 = vadd.f32 %v256, %v540
        %v542 = vpop.f32.mrb[0].mxu0
        %543 = vmatprep.mubr.bf16.mxu0 0
        %544 = vmatmul.mubr.bf16.gmra.mrb[0].mxu0 %v385
        %v545 = vpop.f32.mrb[0].mxu0
        %v546 = vadd.f32 %v256, %v545
        %v547 = vpop.f32.mrb[0].mxu0
        %v548 = vpop.f32.mrb[0].mxu0
        %v549 = vadd.f32 %v256, %v548
        %v550 = vpop.f32.mrb[0].mxu0
        %551 = vdwg.mxu0
        %v552 = vmax.f32 %v426, 0.0
        %v553 = vmax.f32 %v429, 0.0
        %v554 = vmax.f32 %v434, 0.0
        %v555 = vmax.f32 %v437, 0.0
        %v556 = vmax.f32 %v442, 0.0
        %v557 = vmax.f32 %v445, 0.0
        %v558 = vmax.f32 %v450, 0.0
        %v559 = vmax.f32 %v453, 0.0
        %v560 = vmax.f32 %v458, 0.0
        %v561 = vmax.f32 %v461, 0.0
        %v562 = vmax.f32 %v466, 0.0
        %v563 = vmax.f32 %v469, 0.0
        %v564 = vmax.f32 %v474, 0.0
        %v565 = vmax.f32 %v477, 0.0
        %v566 = vmax.f32 %v482, 0.0
        %v567 = vmax.f32 %v485, 0.0
        %v568 = vmax.f32 %v490, 0.0
        %v569 = vmax.f32 %v493, 0.0
        %v570 = vmax.f32 %v498, 0.0
        %v571 = vmax.f32 %v501, 0.0
        %v572 = vmax.f32 %v506, 0.0
        %v573 = vmax.f32 %v509, 0.0
        %v574 = vmax.f32 %v514, 0.0
        %v575 = vmax.f32 %v517, 0.0
        %v576 = vmax.f32 %v522, 0.0
        %v577 = vmax.f32 %v525, 0.0
        %v578 = vmax.f32 %v530, 0.0
        %v579 = vmax.f32 %v533, 0.0
        %v580 = vmax.f32 %v538, 0.0
        %v581 = vmax.f32 %v541, 0.0
        %v582 = vmax.f32 %v546, 0.0
        %v583 = vmax.f32 %v549, 0.0
        %v584 = vpack.c.bf16 %v553, %v552
        %v585 = vpack.c.bf16 %v555, %v554
        %v586 = vpack.c.bf16 %v557, %v556
        %v587 = vpack.c.bf16 %v559, %v558
        %v588 = vpack.c.bf16 %v561, %v560
        %v589 = vpack.c.bf16 %v563, %v562
        %v590 = vpack.c.bf16 %v565, %v564
        %v591 = vpack.c.bf16 %v567, %v566
        %v592 = vpack.c.bf16 %v569, %v568
        %v593 = vpack.c.bf16 %v571, %v570
        %v594 = vpack.c.bf16 %v573, %v572
        %v595 = vpack.c.bf16 %v575, %v574
        %v596 = vpack.c.bf16 %v577, %v576
        %v597 = vpack.c.bf16 %v579, %v578
        %v598 = vpack.c.bf16 %v581, %v580
        %v599 = vpack.c.bf16 %v583, %v582
        %v616 = vunpack.c.l.b16 %v584
        %v617 = vunpack.c.h.b16 %v584
        %v618 = vunpack.c.l.b16 %v585
        %v619 = vunpack.c.h.b16 %v585
        %v620 = vunpack.c.l.b16 %v586
        %v621 = vunpack.c.h.b16 %v586
        %v622 = vunpack.c.l.b16 %v587
        %v623 = vunpack.c.h.b16 %v587
        %v624 = vunpack.c.l.b16 %v588
        %v625 = vunpack.c.h.b16 %v588
        %v626 = vunpack.c.l.b16 %v589
        %v627 = vunpack.c.h.b16 %v589
        %v628 = vunpack.c.l.b16 %v590
        %v629 = vunpack.c.h.b16 %v590
        %v630 = vunpack.c.l.b16 %v591
        %v631 = vunpack.c.h.b16 %v591
        %v632 = vunpack.c.l.b16 %v592
        %v633 = vunpack.c.h.b16 %v592
        %v634 = vunpack.c.l.b16 %v593
        %v635 = vunpack.c.h.b16 %v593
        %v636 = vunpack.c.l.b16 %v594
        %v637 = vunpack.c.h.b16 %v594
        %v638 = vunpack.c.l.b16 %v595
        %v639 = vunpack.c.h.b16 %v595
        %v640 = vunpack.c.l.b16 %v596
        %v641 = vunpack.c.h.b16 %v596
        %v642 = vunpack.c.l.b16 %v597
        %v643 = vunpack.c.h.b16 %v597
        %v644 = vunpack.c.l.b16 %v598
        %v645 = vunpack.c.h.b16 %v598
        %v646 = vunpack.c.l.b16 %v599
        %v647 = vunpack.c.h.b16 %v599
        %v648 = vpack.c.b16 %v616, %v616
        %v649 = vpack.c.b16 %v617, %v617
        %v650 = vpack.c.b16 %v618, %v618
        %v651 = vpack.c.b16 %v619, %v619
        %v652 = vpack.c.b16 %v620, %v620
        %v653 = vpack.c.b16 %v621, %v621
        %v654 = vpack.c.b16 %v622, %v622
        %v655 = vpack.c.b16 %v623, %v623
        %v656 = vpack.c.b16 %v624, %v624
        %v657 = vpack.c.b16 %v625, %v625
        %v658 = vpack.c.b16 %v626, %v626
        %v659 = vpack.c.b16 %v627, %v627
        %v660 = vpack.c.b16 %v628, %v628
        %v661 = vpack.c.b16 %v629, %v629
        %v662 = vpack.c.b16 %v630, %v630
        %v663 = vpack.c.b16 %v631, %v631
        %v664 = vpack.c.b16 %v632, %v632
        %v665 = vpack.c.b16 %v633, %v633
        %v666 = vpack.c.b16 %v634, %v634
        %v667 = vpack.c.b16 %v635, %v635
        %v668 = vpack.c.b16 %v636, %v636
        %v669 = vpack.c.b16 %v637, %v637
        %v670 = vpack.c.b16 %v638, %v638
        %v671 = vpack.c.b16 %v639, %v639
        %v672 = vpack.c.b16 %v640, %v640
        %v673 = vpack.c.b16 %v641, %v641
        %v674 = vpack.c.b16 %v642, %v642
        %v675 = vpack.c.b16 %v643, %v643
        %v676 = vpack.c.b16 %v644, %v644
        %v677 = vpack.c.b16 %v645, %v645
        %v678 = vpack.c.b16 %v646, %v646
        %v679 = vpack.c.b16 %v647, %v647
        %712 = vst [vmem:[%s202] sm:$0xf] %v648
        %713 = vst [vmem:[%s202 + $0x4] sm:$0xf] %v649
        %714 = vst [vmem:[%s202 + $0x8] sm:$0xf] %v650
        %715 = vst [vmem:[%s202 + $0xc] sm:$0xf] %v651
        %716 = vst [vmem:[%s202 + $0x10] sm:$0xf] %v652
        %717 = vst [vmem:[%s202 + $0x14] sm:$0xf] %v653
        %718 = vst [vmem:[%s202 + $0x18] sm:$0xf] %v654
        %719 = vst [vmem:[%s202 + $0x1c] sm:$0xf] %v655
        %720 = vst [vmem:[%s202 + $0x20] sm:$0xf] %v656
        %721 = vst [vmem:[%s202 + $0x24] sm:$0xf] %v657
        %722 = vst [vmem:[%s202 + $0x28] sm:$0xf] %v658
        %723 = vst [vmem:[%s202 + $0x2c] sm:$0xf] %v659
        %724 = vst [vmem:[%s202 + $0x30] sm:$0xf] %v660
        %725 = vst [vmem:[%s202 + $0x34] sm:$0xf] %v661
        %726 = vst [vmem:[%s202 + $0x38] sm:$0xf] %v662
        %727 = vst [vmem:[%s202 + $0x3c] sm:$0xf] %v663
        %728 = vst [vmem:[%s202 + $0x40] sm:$0xf] %v664
        %729 = vst [vmem:[%s202 + $0x44] sm:$0xf] %v665
        %730 = vst [vmem:[%s202 + $0x48] sm:$0xf] %v666
        %731 = vst [vmem:[%s202 + $0x4c] sm:$0xf] %v667
        %732 = vst [vmem:[%s202 + $0x50] sm:$0xf] %v668
        %733 = vst [vmem:[%s202 + $0x54] sm:$0xf] %v669
        %734 = vst [vmem:[%s202 + $0x58] sm:$0xf] %v670
        %735 = vst [vmem:[%s202 + $0x5c] sm:$0xf] %v671
        %736 = vst [vmem:[%s202 + $0x60] sm:$0xf] %v672
        %737 = vst [vmem:[%s202 + $0x64] sm:$0xf] %v673
        %738 = vst [vmem:[%s202 + $0x68] sm:$0xf] %v674
        %739 = vst [vmem:[%s202 + $0x6c] sm:$0xf] %v675
        %740 = vst [vmem:[%s202 + $0x70] sm:$0xf] %v676
        %741 = vst [vmem:[%s202 + $0x74] sm:$0xf] %v677
        %742 = vst [vmem:[%s202 + $0x78] sm:$0xf] %v678
        %743 = vst [vmem:[%s202 + $0x7c] sm:$0xf] %v679
        %s744 = sand.u32 %s117, 1
        %s745 = scalar_lea.sflag [#allocation3], %s744
        %s746 = sand.u32 %s117, 1
        %s747 = smul.addr %s746, 128
        %s748 = scalar_lea.vmem [#allocation2], %s747
        // Predicated region
        $region33: #{tpu_custom_call.1} parent=31 // pred_check
          %p749 = pneg %p127
        $region34: #{tpu_custom_call.1} parent=31 // pred_check_branch
          %751 = sbr.rel (%p749) target = $region36
        $region35: #{tpu_custom_call.1} parent=31 // pred_region
          %s752 = smul.u32 32, %s21
          %s754 = ssub.s32 2048, 2048
          %755 = vsyncadd %s745, %s754
          %s756 = sadd.s32 %s22, %s752
          %s757 = smul.addr %s756, 64
          %s758 = scalar_lea.hbm %s3, %s757
          %s759 = sshll.u32 %s748, 4
          %s760 = int_to_ptr.vmem [resolvable:$true] %s759
          %765 = dma.vmem_to_hbm [thread:$0]  %s760, 2048, %s758, %s745, 64, 64, 4
        $region36: #{tpu_custom_call.1} parent=31 // pred_fallthru
          _
      $region32: #{tpu_custom_call.1} parent=5 // pred_fallthru
        _
      %p766 = scmp.le.s32.totalorder 2, %s12
      // Predicated region
      $region37: #{tpu_custom_call.1} parent=5 // pred_check
        %p767 = pneg %p766
      $region38: #{tpu_custom_call.1} parent=5 // pred_check_branch
        %769 = sbr.rel (%p767) target = $region40
      $region39: #{tpu_custom_call.1} parent=5 // pred_region
        %s770 = ssub.s32 %s12, 2
        // Predicated region
        $region41: #{tpu_custom_call.1} parent=39 // pred_check
          %p771 = pneg %p133
        $region42: #{tpu_custom_call.1} parent=39 // pred_check_branch
          %773 = sbr.rel (%p771) target = $region44
        $region43: #{tpu_custom_call.1} parent=39 // pred_region
          %s774 = sand.u32 %s118, 1
          %s775 = scalar_lea.sflag [#allocation3], %s774
          %s776 = sand.u32 %s118, 1
          %s777 = smul.addr %s776, 128
          %s778 = scalar_lea.vmem [#allocation2], %s777
          %779 = dma.done %s775, 2048
        $region44: #{tpu_custom_call.1} parent=39 // pred_fallthru
          _
      $region40: #{tpu_custom_call.1} parent=5 // pred_fallthru
        _
    $region6: #{tpu_custom_call.1} parent=1 // loop_footer
      %s16 = sadd.s32 1, %s12
    $region7: #{tpu_custom_call.1} parent=1 // loop_footer_branch
      %11 = sbr.rel target = $region3
    $region8: #{tpu_custom_call.1} parent=1 // loop_exit
      _
    %780 = vsyncpa [#allocation3], 1
    %s781 = scalar_lea.sflag [#allocation3], 1
    %782 = vsyncpa %s781, 1

</llo_original>
